<compile_context>
chip_gen: v7x
topology: tpu7x:2x2x1
jax: 0.10.0
libtpu: 0.0.40
codegen_flags: <defaults>
</compile_context>

<pallas_src>
import jax
import jax.numpy as jnp
import numpy as np
from jax.experimental import pallas as pl
from jax.experimental.pallas import tpu as pltpu

# ----------------------------- config (small synthetic sizes) -----------------------------
B = 2                     # batch
S = 8                     # pad_size / sequence length   (power of 2)
H = 32                    # hidden_size
FF = 64                   # encoder feed-forward size
NF = 8                    # num_filters                   (power of 2)
FILTER_SIZES = (2, 3, 4)  # filter_sizes
MAXK = max(FILTER_SIZES)
C = 3                     # num_classes
VOCAB = 64                # synthetic vocab (multiple of 16 for bf16 tiling)
LANES = 128               # lane width / padded output width
BS = B * S                # fused token-slab rows
CW = len(FILTER_SIZES) * NF     # 24 conv-output lanes (filter-major)
SHIFT_STRIDE = 32               # lane stride between shift groups in the conv block
assert (S & (S - 1)) == 0 and (NF & (NF - 1)) == 0
S_SHIFT = S.bit_length() - 1
NF_SHIFT = NF.bit_length() - 1

# ------------------------ packed-weight slab row layout (static) --------------------------
ROW_WQKV = 0        # (H, 3H)                  rows   0:32   (Wq pre-scaled by 1/sqrt(H))
ROW_WO = 32         # (H, H)                   rows  32:64
ROW_W1 = 64         # (H, FF)                  rows  64:96
ROW_W2 = 96         # (FF, H)                  rows  96:160
ROW_CONV = 160      # (H, MAXK*SHIFT_STRIDE)   rows 160:192   shift-major conv block
ROW_FC = 192        # (CW, LANES)              rows 192:224   zero-padded fc weight
W_ROWS = 224        # multiple of 16 (bf16 sublane tile)

(VR_BQKV, VR_BO, VR_LN1G, VR_LN1B, VR_B1, VR_B2, VR_LN2G, VR_LN2B,
 VR_CONVB, VR_FCB) = range(10)
V_ROWS = 16


# ----------------------------------- Pallas kernel ----------------------------------------
def bert_cnn_kernel(ids_ref, mask_ref, tok_ref, pos_ref, wp_ref, vp_ref, o_ref):
    f32 = jnp.float32
    bf16 = jnp.bfloat16

    # ---- fused embedding lookup: exact one-hot @ token-table matmul + positional add ----
    ids = ids_ref[...]                                               # (BS, 1) int32
    viota = jax.lax.broadcasted_iota(jnp.int32, (BS, VOCAB), 1)
    onehot = (viota == ids).astype(bf16)                             # exact 0/1 selection
    x = jnp.dot(onehot, tok_ref[...], preferred_element_type=f32) + pos_ref[...]  # (BS, H)

    # ---- block-diagonal additive attention mask, elementwise from the raw mask row ----
    r_iota = jax.lax.broadcasted_iota(jnp.int32, (BS, BS), 0)
    c_iota = jax.lax.broadcasted_iota(jnp.int32, (BS, BS), 1)
    rb = jnp.right_shift(r_iota, S_SHIFT)                            # query batch
    cb = jnp.right_shift(c_iota, S_SHIFT)                            # key batch
    allowed = (rb == cb) & (mask_ref[...] > 0)                       # (1,BS) broadcast on cols
    neg = jnp.where(allowed, 0.0, -1e9).astype(f32)

    # ---- single-head self-attention (stand-in BERT layer), fused QKV, bf16 MXU ----
    qkv = (jnp.dot(x.astype(bf16), wp_ref[ROW_WQKV:ROW_WQKV + H, :],
                   preferred_element_type=f32)
           + vp_ref[VR_BQKV:VR_BQKV + 1, :])                         # (BS, 128)
    q = qkv[:, 0:H].astype(bf16)                                     # already scaled by 1/sqrt(H)
    k = qkv[:, H:2 * H].astype(bf16)
    v = qkv[:, 2 * H:3 * H].astype(bf16)

    scores = jax.lax.dot_general(q, k, (((1,), (1,)), ((), ())),
                                 preferred_element_type=f32) + neg   # (BS, BS)
    scores = scores - jnp.max(scores, axis=-1, keepdims=True)
    p = jnp.exp(scores)
    p = p * pl.reciprocal(jnp.sum(p, axis=-1, keepdims=True), approx=True)
    ctx = jnp.dot(p.astype(bf16), v, preferred_element_type=f32)     # (BS, H)
    attn = (jnp.dot(ctx.astype(bf16), wp_ref[ROW_WO:ROW_WO + H, :],
                    preferred_element_type=f32)
            + vp_ref[VR_BO:VR_BO + 1, :])[:, 0:H]                    # (BS, H)

    def layernorm(t, g_row, b_row):                                   # f32 elementwise path
        mu = jnp.mean(t, axis=-1, keepdims=True)
        var = jnp.mean((t - mu) ** 2, axis=-1, keepdims=True)
        return ((t - mu) * jax.lax.rsqrt(var + 1e-12)
                * vp_ref[g_row:g_row + 1, 0:H] + vp_ref[b_row:b_row + 1, 0:H])

    h1 = layernorm(x + attn, VR_LN1G, VR_LN1B)
    ff = (jnp.dot(h1.astype(bf16), wp_ref[ROW_W1:ROW_W1 + H, :],
                  preferred_element_type=f32)
          + vp_ref[VR_B1:VR_B1 + 1, :])[:, 0:FF]
    ff = jax.nn.gelu(ff, approximate=True)
    ffo = (jnp.dot(ff.astype(bf16), wp_ref[ROW_W2:ROW_W2 + FF, :],
                   preferred_element_type=f32)
           + vp_ref[VR_B2:VR_B2 + 1, :])[:, 0:H]
    enc = layernorm(h1 + ffo, VR_LN2G, VR_LN2B)                       # encoder_out  (BS, H)

    # ---- TextCNN head: ALL filters & shifts in ONE matmul, combined with row shifts ----
    conv_all = jnp.dot(enc.astype(bf16), wp_ref[ROW_CONV:ROW_CONV + H, :],
                       preferred_element_type=f32)                    # (BS, 128)

    def row_shift(a, j):
        # circular row shift: result[t] = a[t + j]  (== jnp.roll(a, -j, axis=0));
        # wrapped rows land on conv positions that are masked out before the max-pool.
        return jnp.concatenate([a[j:, :], a[:j, :]], axis=0)

    conv_sum = conv_all[:, 0:CW]
    for j in range(1, MAXK):
        blk = conv_all[:, j * SHIFT_STRIDE:j * SHIFT_STRIDE + CW]     # zeros where k_i <= j
        conv_sum = conv_sum + row_shift(blk, j)
    conv_act = jnp.maximum(conv_sum + vp_ref[VR_CONVB:VR_CONVB + 1, 0:CW], 0.0)

    # mask conv rows past each filter's valid length (ReLU output >= 0, so 0 is neutral)
    t_pos = jnp.bitwise_and(jax.lax.broadcasted_iota(jnp.int32, (BS, CW), 0), S - 1)
    fidx = jnp.right_shift(jax.lax.broadcasted_iota(jnp.int32, (BS, CW), 1), NF_SHIFT)
    k_of_col = jnp.zeros((BS, CW), jnp.int32)
    for i, ksz in enumerate(FILTER_SIZES):
        k_of_col = jnp.where(fidx == i, ksz, k_of_col)
    conv_act = jnp.where(t_pos <= (S - k_of_col), conv_act, 0.0)

    # per-batch max-pool over sequence positions -> (B, CW) pooled features
    pooled = jnp.concatenate(
        [jnp.max(conv_act[b * S:(b + 1) * S, :], axis=0, keepdims=True) for b in range(B)],
        axis=0)

    # ---- single FC matmul into a zero-padded, lane-dense logits slab ----
    logits = (jnp.dot(pooled.astype(bf16), wp_ref[ROW_FC:ROW_FC + CW, :],
                      preferred_element_type=f32)
              + vp_ref[VR_FCB:VR_FCB + 1, :])                         # (B, 128)
    o_ref[...] = jnp.concatenate([logits, jnp.zeros((8 - B, LANES), f32)], axis=0)


# ----------------------------------- weight packing ----------------------------------------
def pack_params(p):
    scale = jnp.float32(1.0 / np.sqrt(H))

    def pad_block(a, rows):
        out = jnp.zeros((rows, LANES), jnp.float32)
        return out.at[:a.shape[0], :a.shape[1]].set(a)

    # fused QKV with the attention scale folded into Wq (bq is scaled below)
    wqkv = jnp.concatenate([p["wq"] * scale, p["wk"], p["wv"]], axis=1)       # (H, 3H)

    # shift-major conv block: lanes [j*32 + i*8, j*32 + (i+1)*8) hold filter i, shift j
    conv_block = jnp.zeros((H, LANES), jnp.float32)
    for i, ksz in enumerate(FILTER_SIZES):
        w = p[f"conv_w{i}"]                                                    # (k*H, NF)
        for j in range(ksz):
            c0 = j * SHIFT_STRIDE + i * NF
            conv_block = conv_block.at[:, c0:c0 + NF].set(w[j * H:(j + 1) * H, :])

    slab_w = jnp.concatenate([
        pad_block(wqkv, 32),              # rows   0:32
        pad_block(p["wo"], 32),           # rows  32:64
        pad_block(p["w1"], 32),           # rows  64:96
        pad_block(p["w2"], 64),           # rows  96:160
        conv_block,                       # rows 160:192
        pad_block(p["fc_w"], 32),         # rows 192:224
    ], axis=0).astype(jnp.bfloat16)
    assert slab_w.shape == (W_ROWS, LANES)

    bqkv = jnp.concatenate([p["bq"] * scale, p["bk"], p["bv"]], axis=1)        # (1, 3H)
    conv_b_all = jnp.concatenate([p["conv_b0"], p["conv_b1"], p["conv_b2"]], axis=1)
    vrows = [bqkv, p["bo"], p["ln1_g"], p["ln1_b"], p["b1"], p["b2"],
             p["ln2_g"], p["ln2_b"], conv_b_all, p["fc_b"]]
    slab_v = jnp.zeros((V_ROWS, LANES), jnp.float32)
    for i, r in enumerate(vrows):
        slab_v = slab_v.at[i:i + 1, :r.shape[1]].set(r)

    tok_bf = p["tok_emb"].astype(jnp.bfloat16)                                 # (VOCAB, H)
    pos_tiled = jnp.tile(p["pos_emb"], (B, 1))                                 # (BS, H) f32
    return tok_bf, pos_tiled, slab_w, slab_v


# ------------------------------------- wrapper ---------------------------------------------
def bert_cnn_forward(x, packed):
    """x = (context[int32 B,S], seq_len[B], mask[int32 B,S]) — mirrors the PyTorch tuple."""
    context, _seq_len, mask = x
    tok_bf, pos_tiled, slab_w, slab_v = packed

    ids = context.reshape(BS, 1).astype(jnp.int32)
    mask_row = mask.reshape(1, BS).astype(jnp.int32)

    out = pl.pallas_call(
        bert_cnn_kernel,
        out_shape=jax.ShapeDtypeStruct((8, LANES), jnp.float32),
        grid=(1,),
        in_specs=[
            pl.BlockSpec((BS, 1), lambda i: (0, 0)),            # token ids
            pl.BlockSpec((1, BS), lambda i: (0, 0)),            # raw attention mask row
            pl.BlockSpec((VOCAB, H), lambda i: (0, 0)),         # bf16 token embedding table
            pl.BlockSpec((BS, H), lambda i: (0, 0)),            # tiled positional embeddings
            pl.BlockSpec((W_ROWS, LANES), lambda i: (0, 0)),    # packed bf16 matmul weights
            pl.BlockSpec((V_ROWS, LANES), lambda i: (0, 0)),    # packed f32 biases / LN
        ],
        out_specs=pl.BlockSpec((8, LANES), lambda i: (0, 0)),
        compiler_params=pltpu.CompilerParams(dimension_semantics=("arbitrary",)),
    )(ids, mask_row, tok_bf, pos_tiled, slab_w, slab_v)
    return out[:B, :C]


# --------------------------------- pure-JAX reference --------------------------------------
def reference_forward(x, params):
    context, _seq_len, mask = x
    emb = params["tok_emb"][context] + params["pos_emb"][None, :, :]
    m = mask.astype(jnp.float32)[:, None, :]                     # (B, 1, S)

    def dense(v, w, b):
        return v @ w + b

    q = dense(emb, params["wq"], params["bq"])
    k = dense(emb, params["wk"], params["bk"])
    v = dense(emb, params["wv"], params["bv"])
    scores = jnp.einsum("bqh,bkh->bqk", q, k) / jnp.sqrt(jnp.float32(H))
    scores = scores + (1.0 - m) * (-1e9)
    p = jax.nn.softmax(scores, axis=-1)
    ctx = jnp.einsum("bqk,bkh->bqh", p, v)
    attn = dense(ctx, params["wo"], params["bo"])

    def ln(v, g, b):
        mu = v.mean(-1, keepdims=True)
        var = ((v - mu) ** 2).mean(-1, keepdims=True)
        return (v - mu) * jax.lax.rsqrt(var + 1e-12) * g + b

    h1 = ln(emb + attn, params["ln1_g"], params["ln1_b"])
    ff = jax.nn.gelu(dense(h1, params["w1"], params["b1"]), approximate=True)
    enc = ln(h1 + dense(ff, params["w2"], params["b2"]), params["ln2_g"], params["ln2_b"])

    feats = []
    for i, ksz in enumerate(FILTER_SIZES):
        L = S - ksz + 1
        patches = jnp.concatenate([enc[:, j:j + L, :] for j in range(ksz)], axis=-1)  # (B,L,k*H)
        conv = jnp.maximum(patches @ params[f"conv_w{i}"] + params[f"conv_b{i}"], 0.0)
        feats.append(conv.max(axis=1))                                                # (B, NF)
    feat = jnp.concatenate(feats, axis=-1)
    return feat @ params["fc_w"] + params["fc_b"]


# ------------------------------------ param init -------------------------------------------
def init_params(key):
    keys = iter(jax.random.split(key, 32))

    def nrm(shape, scale):
        return jax.random.normal(next(keys), shape, jnp.float32) * scale

    p = {}
    p["tok_emb"] = nrm((VOCAB, H), 0.02)
    p["pos_emb"] = nrm((S, H), 0.02)
    for name in ("wq", "wk", "wv", "wo"):
        p[name] = nrm((H, H), 0.05)
    for name in ("bq", "bk", "bv", "bo"):
        p[name] = nrm((1, H), 0.01)
    p["ln1_g"] = jnp.ones((1, H), jnp.float32)
    p["ln1_b"] = jnp.zeros((1, H), jnp.float32)
    p["w1"] = nrm((H, FF), 0.05)
    p["b1"] = nrm((1, FF), 0.01)
    p["w2"] = nrm((FF, H), 0.05)
    p["b2"] = nrm((1, H), 0.01)
    p["ln2_g"] = jnp.ones((1, H), jnp.float32)
    p["ln2_b"] = jnp.zeros((1, H), jnp.float32)
    for i, ksz in enumerate(FILTER_SIZES):
        p[f"conv_w{i}"] = nrm((ksz * H, NF), 0.1)   # = torch conv weight.reshape(NF, k*H).T
        p[f"conv_b{i}"] = nrm((1, NF), 0.01)
    p["fc_w"] = nrm((len(FILTER_SIZES) * NF, C), 0.1)
    p["fc_b"] = nrm((1, C), 0.01)
    return p


# --------------------------------------- main ----------------------------------------------
if __name__ == "__main__":
    root = jax.random.PRNGKey(0)
    k_params, k_ctx = jax.random.split(root)

    params = init_params(k_params)
    packed = pack_params(params)          # one-time weight packing (outside the hot path)

    context = jax.random.randint(k_ctx, (B, S), 0, VOCAB, dtype=jnp.int32)
    seq_len = jnp.array([S, 5], dtype=jnp.int32)
    mask = (jnp.arange(S)[None, :] < seq_len[:, None]).astype(jnp.int32)   # (B, S)

    x = (context, seq_len, mask)

    out = jax.block_until_ready(bert_cnn_forward(x, packed))
    ref = jax.block_until_ready(reference_forward(x, params))

    np.testing.assert_allclose(np.asarray(out), np.asarray(ref), rtol=2e-2, atol=2e-2)
    assert out.shape == (B, C)
    print("KERNEL_OK")
</pallas_src>

<mosaic_0001>
module attributes {stable_mosaic.version = 11 : i64} {
  func.func @bert_cnn_kernel(%arg0: i32, %arg1: memref<16x1xi32, #tpu.memory_space<vmem>>, %arg2: memref<1x16xi32, #tpu.memory_space<vmem>>, %arg3: memref<64x32xbf16, #tpu.memory_space<vmem>>, %arg4: memref<16x32xf32, #tpu.memory_space<vmem>>, %arg5: memref<224x128xbf16, #tpu.memory_space<vmem>>, %arg6: memref<16x128xf32, #tpu.memory_space<vmem>>, %arg7: memref<8x128xf32, #tpu.memory_space<vmem>>) attributes {dimension_semantics = [#tpu.dimension_semantics<arbitrary>], iteration_bounds = array<i64: 1>, scalar_prefetch = 0 : i64, scratch_operands = 0 : i64, tpu.core_type = #tpu.core_type<tc>, window_params = [{pipeline_mode = #tpu.pipeline_mode<synchronous>, transform_indices = @transform_0, window_bounds = array<i64: 16, 1>}, {pipeline_mode = #tpu.pipeline_mode<synchronous>, transform_indices = @transform_1, window_bounds = array<i64: 1, 16>}, {pipeline_mode = #tpu.pipeline_mode<synchronous>, transform_indices = @transform_2, window_bounds = array<i64: 64, 32>}, {pipeline_mode = #tpu.pipeline_mode<synchronous>, transform_indices = @transform_3, window_bounds = array<i64: 16, 32>}, {pipeline_mode = #tpu.pipeline_mode<synchronous>, transform_indices = @transform_4, window_bounds = array<i64: 224, 128>}, {pipeline_mode = #tpu.pipeline_mode<synchronous>, transform_indices = @transform_5, window_bounds = array<i64: 16, 128>}, {pipeline_mode = #tpu.pipeline_mode<synchronous>, transform_indices = @transform_6, window_bounds = array<i64: 8, 128>}]} {
    %c0 = arith.constant 0 : index
    %c0_0 = arith.constant 0 : index
    %0 = vector.load %arg1[%c0, %c0_0] : memref<16x1xi32, #tpu.memory_space<vmem>>, vector<16x1xi32>
    %1 = tpu.iota {dimensions = array<i32: 1>} : vector<16x64xi32>
    %2 = vector.broadcast %0 : vector<16x1xi32> to vector<16x64xi32>
    %3 = arith.cmpi eq, %1, %2 : vector<16x64xi32>
    %4 = arith.extui %3 : vector<16x64xi1> to vector<16x64xi32>
    %5 = arith.sitofp %4 : vector<16x64xi32> to vector<16x64xf32>
    %6 = arith.truncf %5 : vector<16x64xf32> to vector<16x64xbf16>
    %c0_1 = arith.constant 0 : index
    %c0_2 = arith.constant 0 : index
    %7 = vector.load %arg3[%c0_1, %c0_2] : memref<64x32xbf16, #tpu.memory_space<vmem>>, vector<64x32xbf16>
    %cst = arith.constant dense<0.000000e+00> : vector<16x32xf32>
    %8 = tpu.matmul %6, %7, %cst {dimension_numbers = #tpu.dot_dimension_numbers<[1], [0], [0], [1], [0, 0, 1, 1], [], []>} : vector<16x64xbf16>, vector<64x32xbf16>, vector<16x32xf32> -> vector<16x32xf32>
    %c0_3 = arith.constant 0 : index
    %c0_4 = arith.constant 0 : index
    %9 = vector.load %arg4[%c0_3, %c0_4] : memref<16x32xf32, #tpu.memory_space<vmem>>, vector<16x32xf32>
    %10 = arith.addf %8, %9 : vector<16x32xf32>
    %11 = tpu.iota {dimensions = array<i32: 0>} : vector<16x16xi32>
    %12 = tpu.iota {dimensions = array<i32: 1>} : vector<16x16xi32>
    %c3_i32 = arith.constant 3 : i32
    %13 = vector.broadcast %c3_i32 : i32 to vector<16x16xi32>
    %14 = arith.shrsi %11, %13 : vector<16x16xi32>
    %c3_i32_5 = arith.constant 3 : i32
    %15 = vector.broadcast %c3_i32_5 : i32 to vector<16x16xi32>
    %16 = arith.shrsi %12, %15 : vector<16x16xi32>
    %17 = arith.cmpi eq, %14, %16 : vector<16x16xi32>
    %c0_6 = arith.constant 0 : index
    %c0_7 = arith.constant 0 : index
    %18 = vector.load %arg2[%c0_6, %c0_7] : memref<1x16xi32, #tpu.memory_space<vmem>>, vector<1x16xi32>
    %c0_i32 = arith.constant 0 : i32
    %19 = vector.broadcast %c0_i32 : i32 to vector<1x16xi32>
    %20 = arith.cmpi sgt, %18, %19 : vector<1x16xi32>
    %21 = vector.broadcast %20 : vector<1x16xi1> to vector<16x16xi1>
    %22 = arith.andi %17, %21 : vector<16x16xi1>
    %cst_8 = arith.constant 0.000000e+00 : f32
    %cst_9 = arith.constant -1.000000e+09 : f32
    %23 = vector.broadcast %cst_8 : f32 to vector<16x16xf32>
    %24 = vector.broadcast %cst_9 : f32 to vector<16x16xf32>
    %25 = arith.select %22, %23, %24 : vector<16x16xi1>, vector<16x16xf32>
    %26 = arith.truncf %10 : vector<16x32xf32> to vector<16x32xbf16>
    %c0_10 = arith.constant 0 : index
    %c0_11 = arith.constant 0 : index
    %27 = vector.load %arg5[%c0_10, %c0_11] : memref<224x128xbf16, #tpu.memory_space<vmem>>, vector<32x128xbf16>
    %cst_12 = arith.constant dense<0.000000e+00> : vector<16x128xf32>
    %28 = tpu.matmul %26, %27, %cst_12 {dimension_numbers = #tpu.dot_dimension_numbers<[1], [0], [0], [1], [0, 0, 1, 1], [], []>} : vector<16x32xbf16>, vector<32x128xbf16>, vector<16x128xf32> -> vector<16x128xf32>
    %c0_13 = arith.constant 0 : index
    %c0_14 = arith.constant 0 : index
    %29 = vector.load %arg6[%c0_13, %c0_14] : memref<16x128xf32, #tpu.memory_space<vmem>>, vector<1x128xf32>
    %30 = vector.broadcast %29 : vector<1x128xf32> to vector<16x128xf32>
    %31 = arith.addf %28, %30 : vector<16x128xf32>
    %32 = vector.extract_strided_slice %31 {offsets = [0, 0], sizes = [16, 32], strides = [1, 1]} : vector<16x128xf32> to vector<16x32xf32>
    %33 = arith.truncf %32 : vector<16x32xf32> to vector<16x32xbf16>
    %34 = vector.extract_strided_slice %31 {offsets = [0, 32], sizes = [16, 32], strides = [1, 1]} : vector<16x128xf32> to vector<16x32xf32>
    %35 = arith.truncf %34 : vector<16x32xf32> to vector<16x32xbf16>
    %36 = vector.extract_strided_slice %31 {offsets = [0, 64], sizes = [16, 32], strides = [1, 1]} : vector<16x128xf32> to vector<16x32xf32>
    %37 = arith.truncf %36 : vector<16x32xf32> to vector<16x32xbf16>
    %cst_15 = arith.constant dense<0.000000e+00> : vector<16x16xf32>
    %38 = tpu.matmul %33, %35, %cst_15 {dimension_numbers = #tpu.dot_dimension_numbers<[1], [1], [0], [0], [0, 0, 1, 0], [], []>} : vector<16x32xbf16>, vector<16x32xbf16>, vector<16x16xf32> -> vector<16x16xf32>
    %39 = arith.addf %38, %25 : vector<16x16xf32>
    %cst_16 = arith.constant dense<0xFF800000> : vector<16xf32>
    %40 = vector.multi_reduction <maximumf>, %39, %cst_16 [1] : vector<16x16xf32> to vector<16xf32>
    %41 = vector.shape_cast %40 : vector<16xf32> to vector<16x1xf32>
    %42 = vector.broadcast %41 : vector<16x1xf32> to vector<16x16xf32>
    %43 = arith.subf %39, %42 : vector<16x16xf32>
    %44 = math.exp %43 : vector<16x16xf32>
    %cst_17 = arith.constant dense<0.000000e+00> : vector<16xf32>
    %45 = vector.multi_reduction <add>, %44, %cst_17 [1] : vector<16x16xf32> to vector<16xf32>
    %46 = vector.shape_cast %45 : vector<16xf32> to vector<16x1xf32>
    %47 = tpu.reciprocal %46 {approx = true} : vector<16x1xf32> -> vector<16x1xf32>
    %48 = vector.broadcast %47 : vector<16x1xf32> to vector<16x16xf32>
    %49 = arith.mulf %44, %48 : vector<16x16xf32>
    %50 = arith.truncf %49 : vector<16x16xf32> to vector<16x16xbf16>
    %cst_18 = arith.constant dense<0.000000e+00> : vector<16x32xf32>
    %51 = tpu.matmul %50, %37, %cst_18 {dimension_numbers = #tpu.dot_dimension_numbers<[1], [0], [0], [1], [0, 0, 1, 1], [], []>} : vector<16x16xbf16>, vector<16x32xbf16>, vector<16x32xf32> -> vector<16x32xf32>
    %52 = arith.truncf %51 : vector<16x32xf32> to vector<16x32xbf16>
    %c32 = arith.constant 32 : index
    %c0_19 = arith.constant 0 : index
    %53 = vector.load %arg5[%c32, %c0_19] : memref<224x128xbf16, #tpu.memory_space<vmem>>, vector<32x128xbf16>
    %cst_20 = arith.constant dense<0.000000e+00> : vector<16x128xf32>
    %54 = tpu.matmul %52, %53, %cst_20 {dimension_numbers = #tpu.dot_dimension_numbers<[1], [0], [0], [1], [0, 0, 1, 1], [], []>} : vector<16x32xbf16>, vector<32x128xbf16>, vector<16x128xf32> -> vector<16x128xf32>
    %c1 = arith.constant 1 : index
    %c0_21 = arith.constant 0 : index
    %55 = vector.load %arg6[%c1, %c0_21] : memref<16x128xf32, #tpu.memory_space<vmem>>, vector<1x128xf32>
    %56 = vector.broadcast %55 : vector<1x128xf32> to vector<16x128xf32>
    %57 = arith.addf %54, %56 : vector<16x128xf32>
    %58 = vector.extract_strided_slice %57 {offsets = [0, 0], sizes = [16, 32], strides = [1, 1]} : vector<16x128xf32> to vector<16x32xf32>
    %59 = arith.addf %10, %58 : vector<16x32xf32>
    %cst_22 = arith.constant dense<0.000000e+00> : vector<16xf32>
    %60 = vector.multi_reduction <add>, %59, %cst_22 [1] : vector<16x32xf32> to vector<16xf32>
    %61 = vector.shape_cast %60 : vector<16xf32> to vector<16x1xf32>
    %cst_23 = arith.constant 3.200000e+01 : f32
    %62 = vector.broadcast %cst_23 : f32 to vector<16x1xf32>
    %63 = arith.divf %61, %62 : vector<16x1xf32>
    %64 = vector.broadcast %63 : vector<16x1xf32> to vector<16x32xf32>
    %65 = arith.subf %59, %64 : vector<16x32xf32>
    %66 = arith.mulf %65, %65 : vector<16x32xf32>
    %cst_24 = arith.constant dense<0.000000e+00> : vector<16xf32>
    %67 = vector.multi_reduction <add>, %66, %cst_24 [1] : vector<16x32xf32> to vector<16xf32>
    %68 = vector.shape_cast %67 : vector<16xf32> to vector<16x1xf32>
    %cst_25 = arith.constant 3.200000e+01 : f32
    %69 = vector.broadcast %cst_25 : f32 to vector<16x1xf32>
    %70 = arith.divf %68, %69 : vector<16x1xf32>
    %71 = vector.broadcast %63 : vector<16x1xf32> to vector<16x32xf32>
    %72 = arith.subf %59, %71 : vector<16x32xf32>
    %cst_26 = arith.constant 9.99999996E-13 : f32
    %73 = vector.broadcast %cst_26 : f32 to vector<16x1xf32>
    %74 = arith.addf %70, %73 : vector<16x1xf32>
    %75 = math.rsqrt %74 : vector<16x1xf32>
    %76 = vector.broadcast %75 : vector<16x1xf32> to vector<16x32xf32>
    %77 = arith.mulf %72, %76 : vector<16x32xf32>
    %c2 = arith.constant 2 : index
    %c0_27 = arith.constant 0 : index
    %78 = vector.load %arg6[%c2, %c0_27] : memref<16x128xf32, #tpu.memory_space<vmem>>, vector<1x32xf32>
    %79 = vector.broadcast %78 : vector<1x32xf32> to vector<16x32xf32>
    %80 = arith.mulf %77, %79 : vector<16x32xf32>
    %c3 = arith.constant 3 : index
    %c0_28 = arith.constant 0 : index
    %81 = vector.load %arg6[%c3, %c0_28] : memref<16x128xf32, #tpu.memory_space<vmem>>, vector<1x32xf32>
    %82 = vector.broadcast %81 : vector<1x32xf32> to vector<16x32xf32>
    %83 = arith.addf %80, %82 : vector<16x32xf32>
    %84 = arith.truncf %83 : vector<16x32xf32> to vector<16x32xbf16>
    %c64 = arith.constant 64 : index
    %c0_29 = arith.constant 0 : index
    %85 = vector.load %arg5[%c64, %c0_29] : memref<224x128xbf16, #tpu.memory_space<vmem>>, vector<32x128xbf16>
    %cst_30 = arith.constant dense<0.000000e+00> : vector<16x128xf32>
    %86 = tpu.matmul %84, %85, %cst_30 {dimension_numbers = #tpu.dot_dimension_numbers<[1], [0], [0], [1], [0, 0, 1, 1], [], []>} : vector<16x32xbf16>, vector<32x128xbf16>, vector<16x128xf32> -> vector<16x128xf32>
    %c4 = arith.constant 4 : index
    %c0_31 = arith.constant 0 : index
    %87 = vector.load %arg6[%c4, %c0_31] : memref<16x128xf32, #tpu.memory_space<vmem>>, vector<1x128xf32>
    %88 = vector.broadcast %87 : vector<1x128xf32> to vector<16x128xf32>
    %89 = arith.addf %86, %88 : vector<16x128xf32>
    %90 = vector.extract_strided_slice %89 {offsets = [0, 0], sizes = [16, 64], strides = [1, 1]} : vector<16x128xf32> to vector<16x64xf32>
    %91 = arith.mulf %90, %90 : vector<16x64xf32>
    %92 = arith.mulf %90, %91 : vector<16x64xf32>
    %cst_32 = arith.constant 4.471500e-02 : f32
    %93 = vector.broadcast %cst_32 : f32 to vector<16x64xf32>
    %94 = arith.mulf %93, %92 : vector<16x64xf32>
    %95 = arith.addf %90, %94 : vector<16x64xf32>
    %cst_33 = arith.constant 0.797884583 : f32
    %96 = vector.broadcast %cst_33 : f32 to vector<16x64xf32>
    %97 = arith.mulf %96, %95 : vector<16x64xf32>
    %98 = math.tanh %97 : vector<16x64xf32>
    %cst_34 = arith.constant 1.000000e+00 : f32
    %99 = vector.broadcast %cst_34 : f32 to vector<16x64xf32>
    %100 = arith.addf %99, %98 : vector<16x64xf32>
    %cst_35 = arith.constant 5.000000e-01 : f32
    %101 = vector.broadcast %cst_35 : f32 to vector<16x64xf32>
    %102 = arith.mulf %101, %100 : vector<16x64xf32>
    %103 = arith.mulf %90, %102 : vector<16x64xf32>
    %104 = arith.truncf %103 : vector<16x64xf32> to vector<16x64xbf16>
    %c96 = arith.constant 96 : index
    %c0_36 = arith.constant 0 : index
    %105 = vector.load %arg5[%c96, %c0_36] : memref<224x128xbf16, #tpu.memory_space<vmem>>, vector<64x128xbf16>
    %cst_37 = arith.constant dense<0.000000e+00> : vector<16x128xf32>
    %106 = tpu.matmul %104, %105, %cst_37 {dimension_numbers = #tpu.dot_dimension_numbers<[1], [0], [0], [1], [0, 0, 1, 1], [], []>} : vector<16x64xbf16>, vector<64x128xbf16>, vector<16x128xf32> -> vector<16x128xf32>
    %c5 = arith.constant 5 : index
    %c0_38 = arith.constant 0 : index
    %107 = vector.load %arg6[%c5, %c0_38] : memref<16x128xf32, #tpu.memory_space<vmem>>, vector<1x128xf32>
    %108 = vector.broadcast %107 : vector<1x128xf32> to vector<16x128xf32>
    %109 = arith.addf %106, %108 : vector<16x128xf32>
    %110 = vector.extract_strided_slice %109 {offsets = [0, 0], sizes = [16, 32], strides = [1, 1]} : vector<16x128xf32> to vector<16x32xf32>
    %111 = arith.addf %83, %110 : vector<16x32xf32>
    %cst_39 = arith.constant dense<0.000000e+00> : vector<16xf32>
    %112 = vector.multi_reduction <add>, %111, %cst_39 [1] : vector<16x32xf32> to vector<16xf32>
    %113 = vector.shape_cast %112 : vector<16xf32> to vector<16x1xf32>
    %cst_40 = arith.constant 3.200000e+01 : f32
    %114 = vector.broadcast %cst_40 : f32 to vector<16x1xf32>
    %115 = arith.divf %113, %114 : vector<16x1xf32>
    %116 = vector.broadcast %115 : vector<16x1xf32> to vector<16x32xf32>
    %117 = arith.subf %111, %116 : vector<16x32xf32>
    %118 = arith.mulf %117, %117 : vector<16x32xf32>
    %cst_41 = arith.constant dense<0.000000e+00> : vector<16xf32>
    %119 = vector.multi_reduction <add>, %118, %cst_41 [1] : vector<16x32xf32> to vector<16xf32>
    %120 = vector.shape_cast %119 : vector<16xf32> to vector<16x1xf32>
    %cst_42 = arith.constant 3.200000e+01 : f32
    %121 = vector.broadcast %cst_42 : f32 to vector<16x1xf32>
    %122 = arith.divf %120, %121 : vector<16x1xf32>
    %123 = vector.broadcast %115 : vector<16x1xf32> to vector<16x32xf32>
    %124 = arith.subf %111, %123 : vector<16x32xf32>
    %cst_43 = arith.constant 9.99999996E-13 : f32
    %125 = vector.broadcast %cst_43 : f32 to vector<16x1xf32>
    %126 = arith.addf %122, %125 : vector<16x1xf32>
    %127 = math.rsqrt %126 : vector<16x1xf32>
    %128 = vector.broadcast %127 : vector<16x1xf32> to vector<16x32xf32>
    %129 = arith.mulf %124, %128 : vector<16x32xf32>
    %c6 = arith.constant 6 : index
    %c0_44 = arith.constant 0 : index
    %130 = vector.load %arg6[%c6, %c0_44] : memref<16x128xf32, #tpu.memory_space<vmem>>, vector<1x32xf32>
    %131 = vector.broadcast %130 : vector<1x32xf32> to vector<16x32xf32>
    %132 = arith.mulf %129, %131 : vector<16x32xf32>
    %c7 = arith.constant 7 : index
    %c0_45 = arith.constant 0 : index
    %133 = vector.load %arg6[%c7, %c0_45] : memref<16x128xf32, #tpu.memory_space<vmem>>, vector<1x32xf32>
    %134 = vector.broadcast %133 : vector<1x32xf32> to vector<16x32xf32>
    %135 = arith.addf %132, %134 : vector<16x32xf32>
    %136 = arith.truncf %135 : vector<16x32xf32> to vector<16x32xbf16>
    %c160 = arith.constant 160 : index
    %c0_46 = arith.constant 0 : index
    %137 = vector.load %arg5[%c160, %c0_46] : memref<224x128xbf16, #tpu.memory_space<vmem>>, vector<32x128xbf16>
    %cst_47 = arith.constant dense<0.000000e+00> : vector<16x128xf32>
    %138 = tpu.matmul %136, %137, %cst_47 {dimension_numbers = #tpu.dot_dimension_numbers<[1], [0], [0], [1], [0, 0, 1, 1], [], []>} : vector<16x32xbf16>, vector<32x128xbf16>, vector<16x128xf32> -> vector<16x128xf32>
    %139 = vector.extract_strided_slice %138 {offsets = [0, 0], sizes = [16, 24], strides = [1, 1]} : vector<16x128xf32> to vector<16x24xf32>
    %140 = vector.extract_strided_slice %138 {offsets = [0, 32], sizes = [16, 24], strides = [1, 1]} : vector<16x128xf32> to vector<16x24xf32>
    %141 = vector.extract_strided_slice %140 {offsets = [1, 0], sizes = [15, 24], strides = [1, 1]} : vector<16x24xf32> to vector<15x24xf32>
    %142 = vector.extract_strided_slice %140 {offsets = [0, 0], sizes = [1, 24], strides = [1, 1]} : vector<16x24xf32> to vector<1x24xf32>
    %143 = tpu.concatenate %141, %142 in 0 : vector<15x24xf32>, vector<1x24xf32> -> vector<16x24xf32>
    %144 = arith.addf %139, %143 : vector<16x24xf32>
    %145 = vector.extract_strided_slice %138 {offsets = [0, 64], sizes = [16, 24], strides = [1, 1]} : vector<16x128xf32> to vector<16x24xf32>
    %146 = vector.extract_strided_slice %145 {offsets = [2, 0], sizes = [14, 24], strides = [1, 1]} : vector<16x24xf32> to vector<14x24xf32>
    %147 = vector.extract_strided_slice %145 {offsets = [0, 0], sizes = [2, 24], strides = [1, 1]} : vector<16x24xf32> to vector<2x24xf32>
    %148 = tpu.concatenate %146, %147 in 0 : vector<14x24xf32>, vector<2x24xf32> -> vector<16x24xf32>
    %149 = arith.addf %144, %148 : vector<16x24xf32>
    %150 = vector.extract_strided_slice %138 {offsets = [0, 96], sizes = [16, 24], strides = [1, 1]} : vector<16x128xf32> to vector<16x24xf32>
    %151 = vector.extract_strided_slice %150 {offsets = [3, 0], sizes = [13, 24], strides = [1, 1]} : vector<16x24xf32> to vector<13x24xf32>
    %152 = vector.extract_strided_slice %150 {offsets = [0, 0], sizes = [3, 24], strides = [1, 1]} : vector<16x24xf32> to vector<3x24xf32>
    %153 = tpu.concatenate %151, %152 in 0 : vector<13x24xf32>, vector<3x24xf32> -> vector<16x24xf32>
    %154 = arith.addf %149, %153 : vector<16x24xf32>
    %c8 = arith.constant 8 : index
    %c0_48 = arith.constant 0 : index
    %155 = vector.load %arg6[%c8, %c0_48] : memref<16x128xf32, #tpu.memory_space<vmem>>, vector<1x24xf32>
    %156 = vector.broadcast %155 : vector<1x24xf32> to vector<16x24xf32>
    %157 = arith.addf %154, %156 : vector<16x24xf32>
    %cst_49 = arith.constant 0.000000e+00 : f32
    %158 = vector.broadcast %cst_49 : f32 to vector<16x24xf32>
    %159 = arith.maximumf %157, %158 : vector<16x24xf32>
    %160 = tpu.iota {dimensions = array<i32: 0>} : vector<16x24xi32>
    %c7_i32 = arith.constant 7 : i32
    %161 = vector.broadcast %c7_i32 : i32 to vector<16x24xi32>
    %162 = arith.andi %160, %161 : vector<16x24xi32>
    %163 = tpu.iota {dimensions = array<i32: 1>} : vector<16x24xi32>
    %c3_i32_50 = arith.constant 3 : i32
    %164 = vector.broadcast %c3_i32_50 : i32 to vector<16x24xi32>
    %165 = arith.shrsi %163, %164 : vector<16x24xi32>
    %c0_i32_51 = arith.constant 0 : i32
    %166 = vector.broadcast %c0_i32_51 : i32 to vector<16x24xi32>
    %c0_i32_52 = arith.constant 0 : i32
    %167 = vector.broadcast %c0_i32_52 : i32 to vector<16x24xi32>
    %168 = arith.cmpi eq, %165, %167 : vector<16x24xi32>
    %c2_i32 = arith.constant 2 : i32
    %169 = vector.broadcast %c2_i32 : i32 to vector<16x24xi32>
    %170 = arith.select %168, %169, %166 : vector<16x24xi1>, vector<16x24xi32>
    %c1_i32 = arith.constant 1 : i32
    %171 = vector.broadcast %c1_i32 : i32 to vector<16x24xi32>
    %172 = arith.cmpi eq, %165, %171 : vector<16x24xi32>
    %c3_i32_53 = arith.constant 3 : i32
    %173 = vector.broadcast %c3_i32_53 : i32 to vector<16x24xi32>
    %174 = arith.select %172, %173, %170 : vector<16x24xi1>, vector<16x24xi32>
    %c2_i32_54 = arith.constant 2 : i32
    %175 = vector.broadcast %c2_i32_54 : i32 to vector<16x24xi32>
    %176 = arith.cmpi eq, %165, %175 : vector<16x24xi32>
    %c4_i32 = arith.constant 4 : i32
    %177 = vector.broadcast %c4_i32 : i32 to vector<16x24xi32>
    %178 = arith.select %176, %177, %174 : vector<16x24xi1>, vector<16x24xi32>
    %c8_i32 = arith.constant 8 : i32
    %179 = vector.broadcast %c8_i32 : i32 to vector<16x24xi32>
    %180 = arith.subi %179, %178 : vector<16x24xi32>
    %181 = arith.cmpi sle, %162, %180 : vector<16x24xi32>
    %cst_55 = arith.constant 0.000000e+00 : f32
    %182 = vector.broadcast %cst_55 : f32 to vector<16x24xf32>
    %183 = arith.select %181, %159, %182 : vector<16x24xi1>, vector<16x24xf32>
    %184 = vector.extract_strided_slice %183 {offsets = [0, 0], sizes = [8, 24], strides = [1, 1]} : vector<16x24xf32> to vector<8x24xf32>
    %cst_56 = arith.constant dense<0xFF800000> : vector<24xf32>
    %185 = vector.multi_reduction <maximumf>, %184, %cst_56 [0] : vector<8x24xf32> to vector<24xf32>
    %186 = vector.shape_cast %185 : vector<24xf32> to vector<1x24xf32>
    %187 = vector.extract_strided_slice %183 {offsets = [8, 0], sizes = [8, 24], strides = [1, 1]} : vector<16x24xf32> to vector<8x24xf32>
    %cst_57 = arith.constant dense<0xFF800000> : vector<24xf32>
    %188 = vector.multi_reduction <maximumf>, %187, %cst_57 [0] : vector<8x24xf32> to vector<24xf32>
    %189 = vector.shape_cast %188 : vector<24xf32> to vector<1x24xf32>
    %190 = tpu.concatenate %186, %189 in 0 : vector<1x24xf32>, vector<1x24xf32> -> vector<2x24xf32>
    %191 = arith.truncf %190 : vector<2x24xf32> to vector<2x24xbf16>
    %c192 = arith.constant 192 : index
    %c0_58 = arith.constant 0 : index
    %192 = vector.load %arg5[%c192, %c0_58] : memref<224x128xbf16, #tpu.memory_space<vmem>>, vector<24x128xbf16>
    %cst_59 = arith.constant dense<0.000000e+00> : vector<2x128xf32>
    %193 = tpu.matmul %191, %192, %cst_59 {dimension_numbers = #tpu.dot_dimension_numbers<[1], [0], [0], [1], [0, 0, 1, 1], [], []>} : vector<2x24xbf16>, vector<24x128xbf16>, vector<2x128xf32> -> vector<2x128xf32>
    %c9 = arith.constant 9 : index
    %c0_60 = arith.constant 0 : index
    %194 = vector.load %arg6[%c9, %c0_60] : memref<16x128xf32, #tpu.memory_space<vmem>>, vector<1x128xf32>
    %195 = vector.broadcast %194 : vector<1x128xf32> to vector<2x128xf32>
    %196 = arith.addf %193, %195 : vector<2x128xf32>
    %cst_61 = arith.constant 0.000000e+00 : f32
    %197 = vector.broadcast %cst_61 : f32 to vector<6x128xf32>
    %198 = tpu.concatenate %196, %197 in 0 : vector<2x128xf32>, vector<6x128xf32> -> vector<8x128xf32>
    %c0_62 = arith.constant 0 : index
    %c0_63 = arith.constant 0 : index
    %199 = vector.load %arg7[%c0_62, %c0_63] : memref<8x128xf32, #tpu.memory_space<vmem>>, vector<8x128xf32>
    tpu.vector_store %arg7[%c0_62, %c0_63], %198 {strides = array<i32>} : memref<8x128xf32, #tpu.memory_space<vmem>>, vector<8x128xf32>,
    return
  }
  func.func @transform_0(%arg0: i32) -> (i32, i32) {
    %c0_i32 = arith.constant 0 : i32
    %c0_i32_0 = arith.constant 0 : i32
    %c0_i32_1 = arith.constant 0 : i32
    return %c0_i32, %c0_i32_0 : i32, i32
  }
  func.func @transform_1(%arg0: i32) -> (i32, i32) {
    %c0_i32 = arith.constant 0 : i32
    %c0_i32_0 = arith.constant 0 : i32
    %c0_i32_1 = arith.constant 0 : i32
    return %c0_i32, %c0_i32_0 : i32, i32
  }
  func.func @transform_2(%arg0: i32) -> (i32, i32) {
    %c0_i32 = arith.constant 0 : i32
    %c0_i32_0 = arith.constant 0 : i32
    %c0_i32_1 = arith.constant 0 : i32
    return %c0_i32, %c0_i32_0 : i32, i32
  }
  func.func @transform_3(%arg0: i32) -> (i32, i32) {
    %c0_i32 = arith.constant 0 : i32
    %c0_i32_0 = arith.constant 0 : i32
    %c0_i32_1 = arith.constant 0 : i32
    return %c0_i32, %c0_i32_0 : i32, i32
  }
  func.func @transform_4(%arg0: i32) -> (i32, i32) {
    %c0_i32 = arith.constant 0 : i32
    %c0_i32_0 = arith.constant 0 : i32
    %c0_i32_1 = arith.constant 0 : i32
    return %c0_i32, %c0_i32_0 : i32, i32
  }
  func.func @transform_5(%arg0: i32) -> (i32, i32) {
    %c0_i32 = arith.constant 0 : i32
    %c0_i32_0 = arith.constant 0 : i32
    %c0_i32_1 = arith.constant 0 : i32
    return %c0_i32, %c0_i32_0 : i32, i32
  }
  func.func @transform_6(%arg0: i32) -> (i32, i32) {
    %c0_i32 = arith.constant 0 : i32
    %c0_i32_0 = arith.constant 0 : i32
    %c0_i32_1 = arith.constant 0 : i32
    return %c0_i32, %c0_i32_0 : i32, i32
  }
}

</mosaic_0001>

<llo_original>
// kernel: tpu_custom_call.1
$region0: #{tpu_custom_call.1}
  #allocation0 [shape = 'u32[]', space=smem, size = 0x4, offset = 0x4, fixed_abs, tag = 'smem constant byte address 0x4 - core index']
  #allocation1 [shape = 'u32[144,128]{1,0:T(1,128)}', space=vmem, size = 0x12000, scoped, tag = 'internal scratch']
  %s0 = inlined_call_operand.vmem [shape: s32[16,1], index: 0, kind: input, shape index: {}]
  %s1 = inlined_call_operand.vmem [shape: s32[1,16], index: 1, kind: input, shape index: {}]
  %s2 = inlined_call_operand.vmem [shape: bf16[64,32], index: 2, kind: input, shape index: {}]
  %s3 = inlined_call_operand.vmem [shape: f32[16,32], index: 3, kind: input, shape index: {}]
  %s4 = inlined_call_operand.hbm [shape: bf16[224,128], index: 4, kind: input, shape index: {}]
  %s5 = inlined_call_operand.vmem [shape: f32[16,128], index: 5, kind: input, shape index: {}]
  %s6 = inlined_call_operand.hbm [shape: f32[8,128], index: 6, kind: output, shape index: {}]
  %s7 = sld [smem:[#allocation0]]
  $region38: #{tpu_custom_call.1} parent=0
    _
  %s9 = ssub.s32 1, %s7
  %s10 = scalar_select 0, %s9, %s7
  $region1: #{tpu_custom_call.1} parent=0
    #allocation2 [shape = 'u8[57344]{0}', space=vmem, size = 0xe000, scoped, tag = 'input window, operand 4, single buffered']
    #allocation3 [shape = 's32[1]{0}', space=sflag, size = 0x4, scoped, tag = 'scoped memory for tpu_custom_call.1']
    #allocation4 [shape = 's32[1]{0}', space=sflag, size = 0x4, scoped, tag = 'scoped memory for tpu_custom_call.1']
    #allocation5 [shape = 'u8[4096]{0}', space=vmem, size = 0x1000, scoped, tag = 'output window, operand 0, single buffered']
    %11 = vsyncpa [#allocation3], 0
    %12 = vsyncpa [#allocation4], 0
    // Predicated region
    $region2: #{tpu_custom_call.1} parent=1 // pred_check
      _
    $region3: #{tpu_custom_call.1} parent=1 // pred_check_branch
      %14 = sbr.rel (0) target = $region5
    $region4: #{tpu_custom_call.1} parent=1 // pred_region
      _
    $region5: #{tpu_custom_call.1} parent=1 // pred_fallthru
      _
    // Predicated region
    $region6: #{tpu_custom_call.1} parent=1 // pred_check
      _
    $region7: #{tpu_custom_call.1} parent=1 // pred_check_branch
      %16 = sbr.rel (0) target = $region9
    $region8: #{tpu_custom_call.1} parent=1 // pred_region
      _
    $region9: #{tpu_custom_call.1} parent=1 // pred_fallthru
      _
    // Predicated region
    $region10: #{tpu_custom_call.1} parent=1 // pred_check
      _
    $region11: #{tpu_custom_call.1} parent=1 // pred_check_branch
      %18 = sbr.rel (0) target = $region13
    $region12: #{tpu_custom_call.1} parent=1 // pred_region
      _
    $region13: #{tpu_custom_call.1} parent=1 // pred_fallthru
      _
    // Predicated region
    $region14: #{tpu_custom_call.1} parent=1 // pred_check
      _
    $region15: #{tpu_custom_call.1} parent=1 // pred_check_branch
      %20 = sbr.rel (0) target = $region17
    $region16: #{tpu_custom_call.1} parent=1 // pred_region
      _
    $region17: #{tpu_custom_call.1} parent=1 // pred_fallthru
      _
    // Predicated region
    $region18: #{tpu_custom_call.1} parent=1 // pred_check
      _
    $region19: #{tpu_custom_call.1} parent=1 // pred_check_branch
      %22 = sbr.rel (0) target = $region21
    $region20: #{tpu_custom_call.1} parent=1 // pred_region
      %s24 = ssub.s32 1792, 1792
      %25 = vsyncadd [#allocation3], %s24
      %s26 = sshll.u32 [#allocation2], 4
      %s27 = int_to_ptr.vmem [resolvable:$true] %s26
      %32 = dma.hbm_to_vmem [thread:$0]  %s4, 1792, %s27, [#allocation3], 64, 64, 4
    $region21: #{tpu_custom_call.1} parent=1 // pred_fallthru
      _
    // Predicated region
    $region22: #{tpu_custom_call.1} parent=1 // pred_check
      _
    $region23: #{tpu_custom_call.1} parent=1 // pred_check_branch
      %34 = sbr.rel (0) target = $region25
    $region24: #{tpu_custom_call.1} parent=1 // pred_region
      _
    $region25: #{tpu_custom_call.1} parent=1 // pred_fallthru
      _
    // Predicated region
    $region26: #{tpu_custom_call.1} parent=1 // pred_check
      _
    $region27: #{tpu_custom_call.1} parent=1 // pred_check_branch
      %36 = sbr.rel (0) target = $region29
    $region28: #{tpu_custom_call.1} parent=1 // pred_region
      %37 = dma.done [#allocation3], 1792
    $region29: #{tpu_custom_call.1} parent=1 // pred_fallthru
      _
    %v39 = vld [vmem:[%s0] sm:$0xff]
    %v40 = vld [vmem:[%s0 + $0x8] sm:$0xff]
    %v41 = vlaneseq
    %v42 = vand.u32 %v41, 127
    %43 = vset.pattern.permute.xlu0 0
    %44 = vperm.xlu0 %43, %v39
    %v45 = vpop.permute.xlu0 %44
    %46 = vset.pattern.permute.xlu0 0
    %47 = vperm.xlu0 %46, %v40
    %v48 = vpop.permute.xlu0 %47
    %vm49 = vcmp.eq.s32.totalorder %v42, %v45
    %vm50 = vcmp.eq.s32.totalorder %v42, %v48
    %v51 = vsel %vm49, 1, 0
    %v52 = vsel %vm50, 1, 0
    %v53 = vcvt.s32.f32 %v51
    %v54 = vcvt.s32.f32 %v52
    %v55 = vpack.c.bf16 %v54, %v53
    %v56 = vld [vmem:[%s2] sm:$0xf]
    %v57 = vld [vmem:[%s2 + $0x4] sm:$0xf]
    %v58 = vld [vmem:[%s2 + $0x8] sm:$0xf]
    %v59 = vld [vmem:[%s2 + $0xc] sm:$0xf]
    %v60 = vld [vmem:[%s2 + $0x10] sm:$0xf]
    %v61 = vld [vmem:[%s2 + $0x14] sm:$0xf]
    %v62 = vld [vmem:[%s2 + $0x18] sm:$0xf]
    %v63 = vld [vmem:[%s2 + $0x1c] sm:$0xf]
    %v64 = vld [vmem:[%s3] sm:$0xff]
    %v65 = vld [vmem:[%s3 + $0x8] sm:$0xff]
    %v74 = vunpack.c.l.b16 %v56
    %v75 = vunpack.c.l.b16 %v57
    %v76 = vunpack.c.l.b16 %v58
    %v77 = vunpack.c.l.b16 %v59
    %v78 = vunpack.c.l.b16 %v60
    %v79 = vunpack.c.l.b16 %v61
    %v80 = vunpack.c.l.b16 %v62
    %v81 = vunpack.c.l.b16 %v63
    %v82 = vpack.c.b16 %v75, %v74
    %v83 = vpack.c.b16 %v77, %v76
    %v84 = vpack.c.b16 %v79, %v78
    %v85 = vpack.c.b16 %v81, %v80
    %vm90 = vcmask 523264
    %v92 = vsel %vm90, %v55, 0
    %94 = vmatprep.subr.bf16.mxu0 0
    %95 = vmatpush1.bf16.msra.mxu0 %v82
    %96 = vmatprep.subr.bf16.mxu0 0
    %97 = vmatpush1.bf16.msra.mxu0 %v83
    %98 = vmatprep.subr.bf16.mxu0 0
    %99 = vmatpush1.bf16.msra.mxu0 %v84
    %100 = vmatprep.subr.bf16.mxu0 0
    %101 = vmatpush1.bf16.msra.mxu0 %v85
    %102 = vmatprep.subr.bf16.mxu0 0
    %103 = vmatpush1.bf16.msra.mxu0 0
    %104 = vmatprep.subr.bf16.mxu0 0
    %105 = vmatpush1.bf16.msra.mxu0 0
    %106 = vmatprep.subr.bf16.mxu0 0
    %107 = vmatpush1.bf16.msra.mxu0 0
    %108 = vmatprep.subr.bf16.mxu0 0
    %109 = vmatpush1.bf16.msra.mxu0 0
    %110 = vmatprep.subr.bf16.mxu0 0
    %111 = vmatpush1.bf16.msra.mxu0 0
    %112 = vmatprep.subr.bf16.mxu0 0
    %113 = vmatpush1.bf16.msra.mxu0 0
    %114 = vmatprep.subr.bf16.mxu0 0
    %115 = vmatpush1.bf16.msra.mxu0 0
    %116 = vmatprep.subr.bf16.mxu0 0
    %117 = vmatpush1.bf16.msra.mxu0 0
    %118 = vmatprep.subr.bf16.mxu0 0
    %119 = vmatpush1.bf16.msra.mxu0 0
    %120 = vmatprep.subr.bf16.mxu0 0
    %121 = vmatpush1.bf16.msra.mxu0 0
    %122 = vmatprep.subr.bf16.mxu0 0
    %123 = vmatpush1.bf16.msra.mxu0 0
    %124 = vmatprep.subr.bf16.mxu0 0
    %125 = vmatpush1.bf16.msra.mxu0 0
    %126 = vmatprep.mubr.bf16.mxu0 0
    %127 = vmatmul.mubr.bf16.gmra.mrb[0].mxu0 %v92
    %v128 = vpop.f32.mrb[0].mxu0
    %v129 = vadd.f32 %v64, %v128
    %v130 = vpop.f32.mrb[0].mxu0
    %v131 = vpop.f32.mrb[0].mxu0
    %v132 = vadd.f32 %v65, %v131
    %v133 = vpop.f32.mrb[0].mxu0
    %134 = vdwg.mxu0
    %v135 = vlaneseq
    %v136 = vshrl.u32 %v135, 7
    %v137 = vadd.s32 %v136, 8
    %v138 = vshra.s32 %v136, 3
    %v139 = vshra.s32 %v137, 3
    %v140 = vshra.s32 %v42, 3
    %vm141 = vcmp.eq.s32.totalorder %v138, %v140
    %vm142 = vcmp.eq.s32.totalorder %v139, %v140
    %v143 = vld [vmem:[%s1] sm:$0x1]
    %vm144 = vcmp.gt.s32.totalorder %v143, 0
    %v145 = vsel %vm144, 1, 0
    %v146 = vlaneseq
    %v147 = vshrl.u32 %v146, 7
    %v148 = vsub.s32 0, %v147
    %v149 = vrot.slane %v145, %v148
    %vm150 = vcmp.eq.s32.totalorder %v149, 1
    %vm151 = vmand %vm141, %vm150
    %vm152 = vmand %vm142, %vm150
    %v153 = vsel %vm151, 0.0, -1e+09
    %v154 = vsel %vm152, 0.0, -1e+09
    %v155 = vpack.c.bf16 %v132, %v129
    %v156 = vld [vmem:[#allocation2] sm:$0xf]
    %v157 = vld [vmem:[#allocation2 + $0x4] sm:$0xf]
    %v158 = vld [vmem:[#allocation2 + $0x8] sm:$0xf]
    %v159 = vld [vmem:[#allocation2 + $0xc] sm:$0xf]
    %v160 = vld [vmem:[%s5] sm:$0x1]
    %v161 = vlaneseq
    %v162 = vshrl.u32 %v161, 7
    %v163 = vsub.s32 0, %v162
    %v164 = vrot.slane %v160, %v163
    %v169 = vunpack.c.l.b16 %v156
    %v170 = vunpack.c.l.b16 %v157
    %v171 = vunpack.c.l.b16 %v158
    %v172 = vunpack.c.l.b16 %v159
    %v173 = vpack.c.b16 %v170, %v169
    %v174 = vpack.c.b16 %v172, %v171
    %vm177 = vcmask 261120
    %v179 = vsel %vm177, %v155, 0
    %181 = vmatprep.subr.bf16.mxu0 0
    %182 = vmatpush1.bf16.msra.mxu0 %v173
    %183 = vmatprep.subr.bf16.mxu0 0
    %184 = vmatpush1.bf16.msra.mxu0 %v174
    %185 = vmatprep.subr.bf16.mxu0 0
    %186 = vmatpush1.bf16.msra.mxu0 0
    %187 = vmatprep.subr.bf16.mxu0 0
    %188 = vmatpush1.bf16.msra.mxu0 0
    %189 = vmatprep.subr.bf16.mxu0 0
    %190 = vmatpush1.bf16.msra.mxu0 0
    %191 = vmatprep.subr.bf16.mxu0 0
    %192 = vmatpush1.bf16.msra.mxu0 0
    %193 = vmatprep.subr.bf16.mxu0 0
    %194 = vmatpush1.bf16.msra.mxu0 0
    %195 = vmatprep.subr.bf16.mxu0 0
    %196 = vmatpush1.bf16.msra.mxu0 0
    %197 = vmatprep.subr.bf16.mxu0 0
    %198 = vmatpush1.bf16.msra.mxu0 0
    %199 = vmatprep.subr.bf16.mxu0 0
    %200 = vmatpush1.bf16.msra.mxu0 0
    %201 = vmatprep.subr.bf16.mxu0 0
    %202 = vmatpush1.bf16.msra.mxu0 0
    %203 = vmatprep.subr.bf16.mxu0 0
    %204 = vmatpush1.bf16.msra.mxu0 0
    %205 = vmatprep.subr.bf16.mxu0 0
    %206 = vmatpush1.bf16.msra.mxu0 0
    %207 = vmatprep.subr.bf16.mxu0 0
    %208 = vmatpush1.bf16.msra.mxu0 0
    %209 = vmatprep.subr.bf16.mxu0 0
    %210 = vmatpush1.bf16.msra.mxu0 0
    %211 = vmatprep.subr.bf16.mxu0 0
    %212 = vmatpush1.bf16.msra.mxu0 0
    %213 = vmatprep.mubr.bf16.mxu0 0
    %214 = vmatmul.mubr.bf16.gmra.mrb[0].mxu0 %v179
    %v215 = vpop.f32.mrb[0].mxu0
    %v216 = vadd.f32 %v164, %v215
    %v217 = vpop.f32.mrb[0].mxu0
    %v218 = vpop.f32.mrb[0].mxu0
    %v219 = vadd.f32 %v164, %v218
    %v220 = vpop.f32.mrb[0].mxu0
    %221 = vdwg.mxu0
    %v222 = vpack.c.bf16 %v219, %v216
    %224 = vrot.lane.b32.xlu0 %v222, 96
    %v225 = vpop.permute.xlu0 %224
    %v227 = vsel %vm177, %v222, 0
    %v230 = vsel %vm177, %v225, 0
    %232 = vmatprep.subr.bf16.mxu0 0
    %233 = vmatpush1.bf16.xpose.msra.mxu0 %v230
    %234 = vmatprep.subr.bf16.mxu0 0
    %235 = vmatpush1.bf16.xpose.msra.mxu0 0
    %236 = vmatprep.subr.bf16.mxu0 0
    %237 = vmatpush1.bf16.xpose.msra.mxu0 0
    %238 = vmatprep.subr.bf16.mxu0 0
    %239 = vmatpush1.bf16.xpose.msra.mxu0 0
    %240 = vmatprep.subr.bf16.mxu0 0
    %241 = vmatpush1.bf16.xpose.msra.mxu0 0
    %242 = vmatprep.subr.bf16.mxu0 0
    %243 = vmatpush1.bf16.xpose.msra.mxu0 0
    %244 = vmatprep.subr.bf16.mxu0 0
    %245 = vmatpush1.bf16.xpose.msra.mxu0 0
    %246 = vmatprep.subr.bf16.mxu0 0
    %247 = vmatpush1.bf16.xpose.msra.mxu0 0
    %248 = vmatprep.subr.bf16.mxu0 0
    %249 = vmatpush1.bf16.xpose.msra.mxu0 0
    %250 = vmatprep.subr.bf16.mxu0 0
    %251 = vmatpush1.bf16.xpose.msra.mxu0 0
    %252 = vmatprep.subr.bf16.mxu0 0
    %253 = vmatpush1.bf16.xpose.msra.mxu0 0
    %254 = vmatprep.subr.bf16.mxu0 0
    %255 = vmatpush1.bf16.xpose.msra.mxu0 0
    %256 = vmatprep.subr.bf16.mxu0 0
    %257 = vmatpush1.bf16.xpose.msra.mxu0 0
    %258 = vmatprep.subr.bf16.mxu0 0
    %259 = vmatpush1.bf16.xpose.msra.mxu0 0
    %260 = vmatprep.subr.bf16.mxu0 0
    %261 = vmatpush1.bf16.xpose.msra.mxu0 0
    %262 = vmatprep.subr.bf16.mxu0 0
    %263 = vmatpush1.bf16.xpose.msra.mxu0 0
    %264 = vmatprep.mubr.bf16.mxu0 0
    %265 = vmatmul.mubr.bf16.gmra.mrb[0].mxu0 %v227
    %v266 = vpop.f32.mrb[0].mxu0
    %v267 = vadd.f32 %v153, %v266
    %v268 = vpop.f32.mrb[0].mxu0
    %v269 = vpop.f32.mrb[0].mxu0
    %v270 = vadd.f32 %v154, %v269
    %v271 = vpop.f32.mrb[0].mxu0
    %272 = vdwg.mxu0
    %vm273 = vcmask 130048
    %v274 = vsel %vm273, %v267, -inf
    %275 = vmax.xlane.f32.xlu0 %v274
    %v276 = vpop.xlane.xlu0 %275
    %v277 = vsel %vm273, %v270, -inf
    %278 = vmax.xlane.f32.xlu0 %v277
    %v279 = vpop.xlane.xlu0 %278
    %v280 = vsub.f32 %v267, %v276
    %v281 = vsub.f32 %v270, %v279
    %v282 = vmul.f32 %v280, 1.442695
    %v283 = vpow.pop %v282
    %v284 = vmul.f32 %v281, 1.442695
    %v285 = vpow.pop %v284
    %v286 = vsel %vm273, %v283, 0.0
    %287 = vadd.xlane.f32.xlu0 %v286
    %v288 = vpop.xlane.xlu0 %287
    %v289 = vsel %vm273, %v285, 0.0
    %290 = vadd.xlane.f32.xlu0 %v289
    %v291 = vpop.xlane.xlu0 %290
    %v292 = vrcp.pop %v288
    %v293 = vrcp.pop %v291
    %v294 = vmul.f32 %v283, %v292
    %v295 = vmul.f32 %v285, %v293
    %v296 = vpack.c.bf16 %v295, %v294
    %297 = vrot.lane.b32.xlu0 %v222, 64
    %v298 = vpop.permute.xlu0 %297
    %v301 = vsel %vm273, %v296, 0
    %303 = vmatprep.subr.bf16.mxu0 0
    %304 = vmatpush1.bf16.msra.mxu0 %v298
    %305 = vmatprep.subr.bf16.mxu0 0
    %306 = vmatpush1.bf16.msra.mxu0 0
    %307 = vmatprep.subr.bf16.mxu0 0
    %308 = vmatpush1.bf16.msra.mxu0 0
    %309 = vmatprep.subr.bf16.mxu0 0
    %310 = vmatpush1.bf16.msra.mxu0 0
    %311 = vmatprep.subr.bf16.mxu0 0
    %312 = vmatpush1.bf16.msra.mxu0 0
    %313 = vmatprep.subr.bf16.mxu0 0
    %314 = vmatpush1.bf16.msra.mxu0 0
    %315 = vmatprep.subr.bf16.mxu0 0
    %316 = vmatpush1.bf16.msra.mxu0 0
    %317 = vmatprep.subr.bf16.mxu0 0
    %318 = vmatpush1.bf16.msra.mxu0 0
    %319 = vmatprep.subr.bf16.mxu0 0
    %320 = vmatpush1.bf16.msra.mxu0 0
    %321 = vmatprep.subr.bf16.mxu0 0
    %322 = vmatpush1.bf16.msra.mxu0 0
    %323 = vmatprep.subr.bf16.mxu0 0
    %324 = vmatpush1.bf16.msra.mxu0 0
    %325 = vmatprep.subr.bf16.mxu0 0
    %326 = vmatpush1.bf16.msra.mxu0 0
    %327 = vmatprep.subr.bf16.mxu0 0
    %328 = vmatpush1.bf16.msra.mxu0 0
    %329 = vmatprep.subr.bf16.mxu0 0
    %330 = vmatpush1.bf16.msra.mxu0 0
    %331 = vmatprep.subr.bf16.mxu0 0
    %332 = vmatpush1.bf16.msra.mxu0 0
    %333 = vmatprep.subr.bf16.mxu0 0
    %334 = vmatpush1.bf16.msra.mxu0 0
    %335 = vmatprep.mubr.bf16.mxu0 0
    %336 = vmatmul.mubr.bf16.gmra.mrb[0].mxu0 %v301
    %v337 = vpop.f32.mrb[0].mxu0
    %v338 = vadd.f32 0.0, %v337
    %v339 = vpop.f32.mrb[0].mxu0
    %v340 = vpop.f32.mrb[0].mxu0
    %v341 = vadd.f32 0.0, %v340
    %v342 = vpop.f32.mrb[0].mxu0
    %343 = vdwg.mxu0
    %v344 = vpack.c.bf16 %v341, %v338
    %v345 = vld [vmem:[#allocation2 + $0x10] sm:$0xf]
    %v346 = vld [vmem:[#allocation2 + $0x14] sm:$0xf]
    %v347 = vld [vmem:[#allocation2 + $0x18] sm:$0xf]
    %v348 = vld [vmem:[#allocation2 + $0x1c] sm:$0xf]
    %v349 = vld [vmem:[%s5 + $0x1] sm:$0x1]
    %v350 = vlaneseq
    %v351 = vshrl.u32 %v350, 7
    %v352 = vsub.s32 0, %v351
    %v353 = vrot.slane %v349, %v352
    %v358 = vunpack.c.l.b16 %v345
    %v359 = vunpack.c.l.b16 %v346
    %v360 = vunpack.c.l.b16 %v347
    %v361 = vunpack.c.l.b16 %v348
    %v362 = vpack.c.b16 %v359, %v358
    %v363 = vpack.c.b16 %v361, %v360
    %v367 = vsel %vm177, %v344, 0
    %369 = vmatprep.subr.bf16.mxu0 0
    %370 = vmatpush1.bf16.msra.mxu0 %v362
    %371 = vmatprep.subr.bf16.mxu0 0
    %372 = vmatpush1.bf16.msra.mxu0 %v363
    %373 = vmatprep.subr.bf16.mxu0 0
    %374 = vmatpush1.bf16.msra.mxu0 0
    %375 = vmatprep.subr.bf16.mxu0 0
    %376 = vmatpush1.bf16.msra.mxu0 0
    %377 = vmatprep.subr.bf16.mxu0 0
    %378 = vmatpush1.bf16.msra.mxu0 0
    %379 = vmatprep.subr.bf16.mxu0 0
    %380 = vmatpush1.bf16.msra.mxu0 0
    %381 = vmatprep.subr.bf16.mxu0 0
    %382 = vmatpush1.bf16.msra.mxu0 0
    %383 = vmatprep.subr.bf16.mxu0 0
    %384 = vmatpush1.bf16.msra.mxu0 0
    %385 = vmatprep.subr.bf16.mxu0 0
    %386 = vmatpush1.bf16.msra.mxu0 0
    %387 = vmatprep.subr.bf16.mxu0 0
    %388 = vmatpush1.bf16.msra.mxu0 0
    %389 = vmatprep.subr.bf16.mxu0 0
    %390 = vmatpush1.bf16.msra.mxu0 0
    %391 = vmatprep.subr.bf16.mxu0 0
    %392 = vmatpush1.bf16.msra.mxu0 0
    %393 = vmatprep.subr.bf16.mxu0 0
    %394 = vmatpush1.bf16.msra.mxu0 0
    %395 = vmatprep.subr.bf16.mxu0 0
    %396 = vmatpush1.bf16.msra.mxu0 0
    %397 = vmatprep.subr.bf16.mxu0 0
    %398 = vmatpush1.bf16.msra.mxu0 0
    %399 = vmatprep.subr.bf16.mxu0 0
    %400 = vmatpush1.bf16.msra.mxu0 0
    %401 = vmatprep.mubr.bf16.mxu0 0
    %402 = vmatmul.mubr.bf16.gmra.mrb[0].mxu0 %v367
    %v403 = vpop.f32.mrb[0].mxu0
    %v404 = vadd.f32 %v353, %v403
    %v405 = vpop.f32.mrb[0].mxu0
    %v406 = vpop.f32.mrb[0].mxu0
    %v407 = vadd.f32 %v353, %v406
    %v408 = vpop.f32.mrb[0].mxu0
    %409 = vdwg.mxu0
    %v410 = vadd.f32 %v129, %v404
    %v411 = vadd.f32 %v132, %v407
    %v412 = vsel %vm177, %v410, 0.0
    %413 = vadd.xlane.f32.xlu0 %v412
    %v414 = vpop.xlane.xlu0 %413
    %v415 = vsel %vm177, %v411, 0.0
    %416 = vadd.xlane.f32.xlu0 %v415
    %v417 = vpop.xlane.xlu0 %416
    %v418 = vrcp.pop 32.0
    %v419 = vmul.f32 %v414, %v418
    %v420 = vmul.f32 %v417, %v418
    %v421 = vsub.f32 %v410, %v419
    %v422 = vsub.f32 %v411, %v420
    %v423 = vmul.f32 %v421, %v421
    %v424 = vmul.f32 %v422, %v422
    %v425 = vsel %vm177, %v423, 0.0
    %426 = vadd.xlane.f32.xlu0 %v425
    %v427 = vpop.xlane.xlu0 %426
    %v428 = vsel %vm177, %v424, 0.0
    %429 = vadd.xlane.f32.xlu0 %v428
    %v430 = vpop.xlane.xlu0 %429
    %v431 = vmul.f32 %v427, %v418
    %v432 = vmul.f32 %v430, %v418
    %v433 = vadd.f32 %v431, 1e-12
    %v434 = vadd.f32 %v432, 1e-12
    %v435 = vrsqrt.pop %v433
    %v436 = vrsqrt.pop %v434
    %v437 = vmul.f32 %v421, %v435
    %v438 = vmul.f32 %v422, %v436
    %v439 = vld [vmem:[%s5 + $0x2] sm:$0x1]
    %v440 = vlaneseq
    %v441 = vshrl.u32 %v440, 7
    %v442 = vsub.s32 0, %v441
    %v443 = vrot.slane %v439, %v442
    %v444 = vmul.f32 %v437, %v443
    %v445 = vmul.f32 %v438, %v443
    %v446 = vld [vmem:[%s5 + $0x3] sm:$0x1]
    %v447 = vlaneseq
    %v448 = vshrl.u32 %v447, 7
    %v449 = vsub.s32 0, %v448
    %v450 = vrot.slane %v446, %v449
    %v451 = vadd.f32 %v444, %v450
    %v452 = vadd.f32 %v445, %v450
    %v453 = vpack.c.bf16 %v452, %v451
    %v454 = vld [vmem:[#allocation2 + $0x20] sm:$0xf]
    %v455 = vld [vmem:[#allocation2 + $0x24] sm:$0xf]
    %v456 = vld [vmem:[#allocation2 + $0x28] sm:$0xf]
    %v457 = vld [vmem:[#allocation2 + $0x2c] sm:$0xf]
    %v458 = vld [vmem:[%s5 + $0x4] sm:$0x1]
    %v459 = vlaneseq
    %v460 = vshrl.u32 %v459, 7
    %v461 = vsub.s32 0, %v460
    %v462 = vrot.slane %v458, %v461
    %v467 = vunpack.c.l.b16 %v454
    %v468 = vunpack.c.l.b16 %v455
    %v469 = vunpack.c.l.b16 %v456
    %v470 = vunpack.c.l.b16 %v457
    %v471 = vpack.c.b16 %v468, %v467
    %v472 = vpack.c.b16 %v470, %v469
    %v476 = vsel %vm177, %v453, 0
    %478 = vmatprep.subr.bf16.mxu0 0
    %479 = vmatpush1.bf16.msra.mxu0 %v471
    %480 = vmatprep.subr.bf16.mxu0 0
    %481 = vmatpush1.bf16.msra.mxu0 %v472
    %482 = vmatprep.subr.bf16.mxu0 0
    %483 = vmatpush1.bf16.msra.mxu0 0
    %484 = vmatprep.subr.bf16.mxu0 0
    %485 = vmatpush1.bf16.msra.mxu0 0
    %486 = vmatprep.subr.bf16.mxu0 0
    %487 = vmatpush1.bf16.msra.mxu0 0
    %488 = vmatprep.subr.bf16.mxu0 0
    %489 = vmatpush1.bf16.msra.mxu0 0
    %490 = vmatprep.subr.bf16.mxu0 0
    %491 = vmatpush1.bf16.msra.mxu0 0
    %492 = vmatprep.subr.bf16.mxu0 0
    %493 = vmatpush1.bf16.msra.mxu0 0
    %494 = vmatprep.subr.bf16.mxu0 0
    %495 = vmatpush1.bf16.msra.mxu0 0
    %496 = vmatprep.subr.bf16.mxu0 0
    %497 = vmatpush1.bf16.msra.mxu0 0
    %498 = vmatprep.subr.bf16.mxu0 0
    %499 = vmatpush1.bf16.msra.mxu0 0
    %500 = vmatprep.subr.bf16.mxu0 0
    %501 = vmatpush1.bf16.msra.mxu0 0
    %502 = vmatprep.subr.bf16.mxu0 0
    %503 = vmatpush1.bf16.msra.mxu0 0
    %504 = vmatprep.subr.bf16.mxu0 0
    %505 = vmatpush1.bf16.msra.mxu0 0
    %506 = vmatprep.subr.bf16.mxu0 0
    %507 = vmatpush1.bf16.msra.mxu0 0
    %508 = vmatprep.subr.bf16.mxu0 0
    %509 = vmatpush1.bf16.msra.mxu0 0
    %510 = vmatprep.mubr.bf16.mxu0 0
    %511 = vmatmul.mubr.bf16.gmra.mrb[0].mxu0 %v476
    %v512 = vpop.f32.mrb[0].mxu0
    %v513 = vadd.f32 %v462, %v512
    %v514 = vpop.f32.mrb[0].mxu0
    %v515 = vpop.f32.mrb[0].mxu0
    %v516 = vadd.f32 %v462, %v515
    %v517 = vpop.f32.mrb[0].mxu0
    %518 = vdwg.mxu0
    %v519 = vmul.f32 %v513, %v513
    %v520 = vmul.f32 %v516, %v516
    %v521 = vmul.f32 %v513, %v519
    %v522 = vmul.f32 %v516, %v520
    %v523 = vmul.f32 %v521, 0.044715
    %v524 = vmul.f32 %v522, 0.044715
    %v525 = vadd.f32 %v513, %v523
    %v526 = vadd.f32 %v516, %v524
    %v527 = vmul.f32 %v525, 0.7978846
    %v528 = vmul.f32 %v526, 0.7978846
    %v529 = vtanh.pop %v527
    %v530 = vtanh.pop %v528
    %v531 = vadd.f32 %v529, 1.0
    %v532 = vadd.f32 %v530, 1.0
    %v533 = vmul.f32 %v531, 0.5
    %v534 = vmul.f32 %v532, 0.5
    %v535 = vmul.f32 %v513, %v533
    %v536 = vmul.f32 %v516, %v534
    %v537 = vpack.c.bf16 %v536, %v535
    %v538 = vld [vmem:[#allocation2 + $0x30] sm:$0xf]
    %v539 = vld [vmem:[#allocation2 + $0x34] sm:$0xf]
    %v540 = vld [vmem:[#allocation2 + $0x38] sm:$0xf]
    %v541 = vld [vmem:[#allocation2 + $0x3c] sm:$0xf]
    %v542 = vld [vmem:[#allocation2 + $0x40] sm:$0xf]
    %v543 = vld [vmem:[#allocation2 + $0x44] sm:$0xf]
    %v544 = vld [vmem:[#allocation2 + $0x48] sm:$0xf]
    %v545 = vld [vmem:[#allocation2 + $0x4c] sm:$0xf]
    %v546 = vld [vmem:[%s5 + $0x5] sm:$0x1]
    %v547 = vlaneseq
    %v548 = vshrl.u32 %v547, 7
    %v549 = vsub.s32 0, %v548
    %v550 = vrot.slane %v546, %v549
    %v559 = vunpack.c.l.b16 %v538
    %v560 = vunpack.c.l.b16 %v539
    %v561 = vunpack.c.l.b16 %v540
    %v562 = vunpack.c.l.b16 %v541
    %v563 = vunpack.c.l.b16 %v542
    %v564 = vunpack.c.l.b16 %v543
    %v565 = vunpack.c.l.b16 %v544
    %v566 = vunpack.c.l.b16 %v545
    %v567 = vpack.c.b16 %v560, %v559
    %v568 = vpack.c.b16 %v562, %v561
    %v569 = vpack.c.b16 %v564, %v563
    %v570 = vpack.c.b16 %v566, %v565
    %v576 = vsel %vm90, %v537, 0
    %578 = vmatprep.subr.bf16.mxu0 0
    %579 = vmatpush1.bf16.msra.mxu0 %v567
    %580 = vmatprep.subr.bf16.mxu0 0
    %581 = vmatpush1.bf16.msra.mxu0 %v568
    %582 = vmatprep.subr.bf16.mxu0 0
    %583 = vmatpush1.bf16.msra.mxu0 %v569
    %584 = vmatprep.subr.bf16.mxu0 0
    %585 = vmatpush1.bf16.msra.mxu0 %v570
    %586 = vmatprep.subr.bf16.mxu0 0
    %587 = vmatpush1.bf16.msra.mxu0 0
    %588 = vmatprep.subr.bf16.mxu0 0
    %589 = vmatpush1.bf16.msra.mxu0 0
    %590 = vmatprep.subr.bf16.mxu0 0
    %591 = vmatpush1.bf16.msra.mxu0 0
    %592 = vmatprep.subr.bf16.mxu0 0
    %593 = vmatpush1.bf16.msra.mxu0 0
    %594 = vmatprep.subr.bf16.mxu0 0
    %595 = vmatpush1.bf16.msra.mxu0 0
    %596 = vmatprep.subr.bf16.mxu0 0
    %597 = vmatpush1.bf16.msra.mxu0 0
    %598 = vmatprep.subr.bf16.mxu0 0
    %599 = vmatpush1.bf16.msra.mxu0 0
    %600 = vmatprep.subr.bf16.mxu0 0
    %601 = vmatpush1.bf16.msra.mxu0 0
    %602 = vmatprep.subr.bf16.mxu0 0
    %603 = vmatpush1.bf16.msra.mxu0 0
    %604 = vmatprep.subr.bf16.mxu0 0
    %605 = vmatpush1.bf16.msra.mxu0 0
    %606 = vmatprep.subr.bf16.mxu0 0
    %607 = vmatpush1.bf16.msra.mxu0 0
    %608 = vmatprep.subr.bf16.mxu0 0
    %609 = vmatpush1.bf16.msra.mxu0 0
    %610 = vmatprep.mubr.bf16.mxu0 0
    %611 = vmatmul.mubr.bf16.gmra.mrb[0].mxu0 %v576
    %v612 = vpop.f32.mrb[0].mxu0
    %v613 = vadd.f32 %v550, %v612
    %v614 = vpop.f32.mrb[0].mxu0
    %v615 = vpop.f32.mrb[0].mxu0
    %v616 = vadd.f32 %v550, %v615
    %v617 = vpop.f32.mrb[0].mxu0
    %618 = vdwg.mxu0
    %v619 = vadd.f32 %v451, %v613
    %v620 = vadd.f32 %v452, %v616
    %v621 = vsel %vm177, %v619, 0.0
    %622 = vadd.xlane.f32.xlu0 %v621
    %v623 = vpop.xlane.xlu0 %622
    %v624 = vsel %vm177, %v620, 0.0
    %625 = vadd.xlane.f32.xlu0 %v624
    %v626 = vpop.xlane.xlu0 %625
    %v627 = vmul.f32 %v623, %v418
    %v628 = vmul.f32 %v626, %v418
    %v629 = vsub.f32 %v619, %v627
    %v630 = vsub.f32 %v620, %v628
    %v631 = vmul.f32 %v629, %v629
    %v632 = vmul.f32 %v630, %v630
    %v633 = vsel %vm177, %v631, 0.0
    %634 = vadd.xlane.f32.xlu0 %v633
    %v635 = vpop.xlane.xlu0 %634
    %v636 = vsel %vm177, %v632, 0.0
    %637 = vadd.xlane.f32.xlu0 %v636
    %v638 = vpop.xlane.xlu0 %637
    %v639 = vmul.f32 %v635, %v418
    %v640 = vmul.f32 %v638, %v418
    %v641 = vadd.f32 %v639, 1e-12
    %v642 = vadd.f32 %v640, 1e-12
    %v643 = vrsqrt.pop %v641
    %v644 = vrsqrt.pop %v642
    %v645 = vmul.f32 %v629, %v643
    %v646 = vmul.f32 %v630, %v644
    %v647 = vld [vmem:[%s5 + $0x6] sm:$0x1]
    %v648 = vlaneseq
    %v649 = vshrl.u32 %v648, 7
    %v650 = vsub.s32 0, %v649
    %v651 = vrot.slane %v647, %v650
    %v652 = vmul.f32 %v645, %v651
    %v653 = vmul.f32 %v646, %v651
    %v654 = vld [vmem:[%s5 + $0x7] sm:$0x1]
    %v655 = vlaneseq
    %v656 = vshrl.u32 %v655, 7
    %v657 = vsub.s32 0, %v656
    %v658 = vrot.slane %v654, %v657
    %v659 = vadd.f32 %v652, %v658
    %v660 = vadd.f32 %v653, %v658
    %v661 = vpack.c.bf16 %v660, %v659
    %v662 = vld [vmem:[#allocation2 + $0x50] sm:$0xf]
    %v663 = vld [vmem:[#allocation2 + $0x54] sm:$0xf]
    %v664 = vld [vmem:[#allocation2 + $0x58] sm:$0xf]
    %v665 = vld [vmem:[#allocation2 + $0x5c] sm:$0xf]
    %v670 = vunpack.c.l.b16 %v662
    %v671 = vunpack.c.l.b16 %v663
    %v672 = vunpack.c.l.b16 %v664
    %v673 = vunpack.c.l.b16 %v665
    %v674 = vpack.c.b16 %v671, %v670
    %v675 = vpack.c.b16 %v673, %v672
    %v679 = vsel %vm177, %v661, 0
    %681 = vmatprep.subr.bf16.mxu0 0
    %682 = vmatpush1.bf16.msra.mxu0 %v674
    %683 = vmatprep.subr.bf16.mxu0 0
    %684 = vmatpush1.bf16.msra.mxu0 %v675
    %685 = vmatprep.subr.bf16.mxu0 0
    %686 = vmatpush1.bf16.msra.mxu0 0
    %687 = vmatprep.subr.bf16.mxu0 0
    %688 = vmatpush1.bf16.msra.mxu0 0
    %689 = vmatprep.subr.bf16.mxu0 0
    %690 = vmatpush1.bf16.msra.mxu0 0
    %691 = vmatprep.subr.bf16.mxu0 0
    %692 = vmatpush1.bf16.msra.mxu0 0
    %693 = vmatprep.subr.bf16.mxu0 0
    %694 = vmatpush1.bf16.msra.mxu0 0
    %695 = vmatprep.subr.bf16.mxu0 0
    %696 = vmatpush1.bf16.msra.mxu0 0
    %697 = vmatprep.subr.bf16.mxu0 0
    %698 = vmatpush1.bf16.msra.mxu0 0
    %699 = vmatprep.subr.bf16.mxu0 0
    %700 = vmatpush1.bf16.msra.mxu0 0
    %701 = vmatprep.subr.bf16.mxu0 0
    %702 = vmatpush1.bf16.msra.mxu0 0
    %703 = vmatprep.subr.bf16.mxu0 0
    %704 = vmatpush1.bf16.msra.mxu0 0
    %705 = vmatprep.subr.bf16.mxu0 0
    %706 = vmatpush1.bf16.msra.mxu0 0
    %707 = vmatprep.subr.bf16.mxu0 0
    %708 = vmatpush1.bf16.msra.mxu0 0
    %709 = vmatprep.subr.bf16.mxu0 0
    %710 = vmatpush1.bf16.msra.mxu0 0
    %711 = vmatprep.subr.bf16.mxu0 0
    %712 = vmatpush1.bf16.msra.mxu0 0
    %713 = vmatprep.mubr.bf16.mxu0 0
    %714 = vmatmul.mubr.bf16.gmra.mrb[0].mxu0 %v679
    %v715 = vpop.f32.mrb[0].mxu0
    %v716 = vadd.f32 0.0, %v715
    %v717 = vpop.f32.mrb[0].mxu0
    %v718 = vpop.f32.mrb[0].mxu0
    %v719 = vadd.f32 0.0, %v718
    %v720 = vpop.f32.mrb[0].mxu0
    %721 = vdwg.mxu0
    %vm724 = vcmask 1046528
    %v725 = vrot.slane %v716, 1
    %v726 = vrot.slane %v719, 1
    %v727 = vsel %vm724, %v725, %v726
    %v730 = vsel %vm724, %v726, %v725
    %732 = vrot.lane.b32.xlu0 %v727, 96
    %v733 = vpop.permute.xlu0 %732
    %734 = vrot.lane.b32.xlu0 %v730, 96
    %v735 = vpop.permute.xlu0 %734
    %v738 = vadd.f32 %v716, %v733
    %v739 = vadd.f32 %v719, %v735
    %vm740 = vcmask 1045504
    %v741 = vrot.slane %v716, 2
    %v742 = vrot.slane %v719, 2
    %v743 = vsel %vm740, %v741, %v742
    %v746 = vsel %vm740, %v742, %v741
    %748 = vrot.lane.b32.xlu0 %v743, 64
    %v749 = vpop.permute.xlu0 %748
    %750 = vrot.lane.b32.xlu0 %v746, 64
    %v751 = vpop.permute.xlu0 %750
    %v754 = vadd.f32 %v738, %v749
    %v755 = vadd.f32 %v739, %v751
    %vm756 = vcmask 1044480
    %v757 = vrot.slane %v716, 3
    %v758 = vrot.slane %v719, 3
    %v759 = vsel %vm756, %v757, %v758
    %v762 = vsel %vm756, %v758, %v757
    %764 = vrot.lane.b32.xlu0 %v759, 32
    %v765 = vpop.permute.xlu0 %764
    %766 = vrot.lane.b32.xlu0 %v762, 32
    %v767 = vpop.permute.xlu0 %766
    %v770 = vadd.f32 %v754, %v765
    %v771 = vadd.f32 %v755, %v767
    %v772 = vld [vmem:[%s5 + $0x8] sm:$0x1]
    %v773 = vlaneseq
    %v774 = vshrl.u32 %v773, 7
    %v775 = vsub.s32 0, %v774
    %v776 = vrot.slane %v772, %v775
    %v777 = vadd.f32 %v770, %v776
    %v778 = vadd.f32 %v771, %v776
    %v779 = vmax.f32 %v777, 0.0
    %v780 = vmax.f32 %v778, 0.0
    %v781 = vand.u32 %v136, 7
    %v782 = vand.u32 %v137, 7
    %vm783 = vcmp.eq.s32.totalorder %v140, 0
    %v784 = vsel %vm783, 2, 0
    %vm785 = vcmp.eq.s32.totalorder %v140, 1
    %v786 = vsel %vm785, 3, %v784
    %vm787 = vcmp.eq.s32.totalorder %v140, 2
    %v788 = vsel %vm787, 4, %v786
    %v789 = vsub.s32 8, %v788
    %vm790 = vcmp.le.s32.totalorder %v781, %v789
    %vm791 = vcmp.le.s32.totalorder %v782, %v789
    %v792 = vsel %vm790, %v779, 0.0
    %v793 = vsel %vm791, %v780, 0.0
    %vm794 = vcmask 195584
    %v795 = vsel %vm794, %v792, -inf
    %v796 = vrot.slane %v795, 4
    %v797 = vmax.f32 %v795, %v796
    %v798 = vrot.slane %v797, 2
    %v799 = vmax.f32 %v797, %v798
    %v800 = vrot.slane %v799, 1
    %v801 = vmax.f32 %v799, %v800
    %v802 = vsel %vm794, %v793, -inf
    %v803 = vrot.slane %v802, 4
    %v804 = vmax.f32 %v802, %v803
    %v805 = vrot.slane %v804, 2
    %v806 = vmax.f32 %v804, %v805
    %v807 = vrot.slane %v806, 1
    %v808 = vmax.f32 %v806, %v807
    %vm809 = vcmask 1040384
    %v810 = vsel %vm809, %v801, %v808
    %v811 = vpack.c.bf16 %v810, %v810
    %v812 = vld [vmem:[#allocation2 + $0x60] sm:$0xf]
    %v813 = vld [vmem:[#allocation2 + $0x64] sm:$0xf]
    %v814 = vld [vmem:[#allocation2 + $0x68] sm:$0xf]
    %v815 = vld [vmem:[%s5 + $0x9] sm:$0x1]
    %v816 = vlaneseq
    %v817 = vshrl.u32 %v816, 7
    %v818 = vsub.s32 0, %v817
    %v819 = vrot.slane %v815, %v818
    %v823 = vunpack.c.l.b16 %v812
    %v824 = vunpack.c.l.b16 %v813
    %v825 = vunpack.c.l.b16 %v814
    %v826 = vpack.c.b16 %v824, %v823
    %v827 = vpack.c.b16 %v825, %v825
    %v830 = vsel %vm794, %v811, 0
    %vm832 = vcmask 1043456
    %v834 = vsel %vm832, %v827, 0
    %836 = vmatprep.subr.bf16.mxu0 0
    %837 = vmatpush1.bf16.msra.mxu0 %v826
    %838 = vmatprep.subr.bf16.mxu0 0
    %839 = vmatpush1.bf16.msra.mxu0 %v834
    %840 = vmatprep.subr.bf16.mxu0 0
    %841 = vmatpush1.bf16.msra.mxu0 0
    %842 = vmatprep.subr.bf16.mxu0 0
    %843 = vmatpush1.bf16.msra.mxu0 0
    %844 = vmatprep.subr.bf16.mxu0 0
    %845 = vmatpush1.bf16.msra.mxu0 0
    %846 = vmatprep.subr.bf16.mxu0 0
    %847 = vmatpush1.bf16.msra.mxu0 0
    %848 = vmatprep.subr.bf16.mxu0 0
    %849 = vmatpush1.bf16.msra.mxu0 0
    %850 = vmatprep.subr.bf16.mxu0 0
    %851 = vmatpush1.bf16.msra.mxu0 0
    %852 = vmatprep.subr.bf16.mxu0 0
    %853 = vmatpush1.bf16.msra.mxu0 0
    %854 = vmatprep.subr.bf16.mxu0 0
    %855 = vmatpush1.bf16.msra.mxu0 0
    %856 = vmatprep.subr.bf16.mxu0 0
    %857 = vmatpush1.bf16.msra.mxu0 0
    %858 = vmatprep.subr.bf16.mxu0 0
    %859 = vmatpush1.bf16.msra.mxu0 0
    %860 = vmatprep.subr.bf16.mxu0 0
    %861 = vmatpush1.bf16.msra.mxu0 0
    %862 = vmatprep.subr.bf16.mxu0 0
    %863 = vmatpush1.bf16.msra.mxu0 0
    %864 = vmatprep.subr.bf16.mxu0 0
    %865 = vmatpush1.bf16.msra.mxu0 0
    %866 = vmatprep.subr.bf16.mxu0 0
    %867 = vmatpush1.bf16.msra.mxu0 0
    %868 = vmatprep.mubr.bf16.mxu0 0
    %869 = vmatmul.mubr.bf16.gmra.mrb[0].mxu0 %v830
    %v870 = vpop.f32.mrb[0].mxu0
    %v871 = vadd.f32 %v819, %v870
    %v872 = vpop.f32.mrb[0].mxu0
    %v873 = vpop.f32.mrb[0].mxu0
    %v874 = vpop.f32.mrb[0].mxu0
    %875 = vdwg.mxu0
    %vm876 = vcmask 1041408
    %v877 = vsel %vm876, %v871, 0.0
    %878 = vst [vmem:[#allocation5] sm:$0xff] %v877
    // Predicated region
    $region30: #{tpu_custom_call.1} parent=1 // pred_check
      _
    $region31: #{tpu_custom_call.1} parent=1 // pred_check_branch
      %880 = sbr.rel (0) target = $region33
    $region32: #{tpu_custom_call.1} parent=1 // pred_region
      %s882 = ssub.s32 128, 128
      %883 = vsyncadd [#allocation4], %s882
      %s885 = sshll.u32 [#allocation5], 4
      %s886 = int_to_ptr.vmem [resolvable:$true] %s885
      %888 = dma.vmem_to_hbm [thread:$0]  %s886, 128, %s6, [#allocation4]
    $region33: #{tpu_custom_call.1} parent=1 // pred_fallthru
      _
    // Predicated region
    $region34: #{tpu_custom_call.1} parent=1 // pred_check
      _
    $region35: #{tpu_custom_call.1} parent=1 // pred_check_branch
      %890 = sbr.rel (0) target = $region37
    $region36: #{tpu_custom_call.1} parent=1 // pred_region
      %891 = dma.done [#allocation4], 128
    $region37: #{tpu_custom_call.1} parent=1 // pred_fallthru
      _
    %892 = vsyncpa [#allocation3], 1
    %893 = vsyncpa [#allocation4], 1

</llo_original>
